<compile_context>
chip_gen: v5e
topology: v5e:2x2
jax: 0.10.0
libtpu: 0.0.40
codegen_flags: <defaults>
</compile_context>

<pallas_src>
import random

import jax
import jax.numpy as jnp
from jax.experimental import pallas as pl
from jax.experimental.pallas import tpu as pltpu

_LANES = 1024                    # lane-dense last dim (multiple of 128)
_TINY_BYTES = 256 * 1024         # below this, fused XLA select beats pallas dispatch


def _round_up(a: int, b: int) -> int:
    return (a + b - 1) // b * b


def _pick_block_bytes() -> int:
    """~2 MiB blocks on v5e (16 MiB scoped VMEM default), ~4 MiB on v6e/v7x."""
    try:
        kind = jax.devices()[0].device_kind.lower()
    except Exception:
        kind = ""
    if "v5" in kind:
        return 2 * 1024 * 1024
    return 4 * 1024 * 1024


def _make_threshold_kernel(threshold: float, value: float):
    """Elementwise F.threshold kernel with static params baked in.

    Uses `x <= threshold ? value : x` so NaN is preserved (matches PyTorch).
    """

    def kernel(x_ref, o_ref):
        x = x_ref[...]
        o_ref[...] = jnp.where(x <= threshold, jnp.asarray(value, x.dtype), x)

    return kernel


def _pallas_threshold_2d(x2d: jax.Array, threshold: float, value: float) -> jax.Array:
    rows, lanes = x2d.shape
    dtype = x2d.dtype
    itemsize = jnp.dtype(dtype).itemsize
    # Sublane quantum per dtype: f32 -> 8, bf16/f16 -> 16, int8 -> 32.
    sub = max(8, 32 // itemsize)

    block_bytes = _pick_block_bytes()
    tr_cap = max(sub, (block_bytes // (lanes * itemsize)) // sub * sub)
    tr = min(tr_cap, _round_up(rows, sub))

    # Ensure >= 2 grid steps when possible so the "parallel" axis can shard
    # across both v7x TensorCores (neutral on single-TC v5e/v6e).
    if pl.cdiv(rows, tr) < 2 and rows > sub:
        tr = _round_up(pl.cdiv(rows, 2), sub)

    grid = (pl.cdiv(rows, tr),)   # ragged final block is masked by Pallas

    return pl.pallas_call(
        _make_threshold_kernel(threshold, value),
        out_shape=jax.ShapeDtypeStruct((rows, lanes), dtype),
        grid=grid,
        in_specs=[pl.BlockSpec((tr, lanes), lambda i: (i, 0))],
        out_specs=pl.BlockSpec((tr, lanes), lambda i: (i, 0)),
        compiler_params=pltpu.CompilerParams(
            dimension_semantics=("parallel",),
            vmem_limit_bytes=32 * 1024 * 1024,
        ),
    )(x2d)


def f_threshold(x: jax.Array, threshold: float, value: float) -> jax.Array:
    """Apply F.threshold semantics elementwise (NCHW or any shape)."""
    dtype = x.dtype
    total = x.size
    if total == 0:
        return x
    val = jnp.asarray(value, dtype)

    # Tiny-input fast path: dispatch/plumbing would dominate the kernel.
    if total * jnp.dtype(dtype).itemsize < _TINY_BYTES:
        return jnp.where(x <= threshold, val, x)

    flat = x.reshape(-1)
    bulk = (total // _LANES) * _LANES

    out_bulk = _pallas_threshold_2d(
        flat[:bulk].reshape(-1, _LANES), threshold, value
    ).reshape(-1)

    if bulk == total:
        return out_bulk.reshape(x.shape)

    # Ragged tail (< 1024 elements): negligible work, keep it in plain XLA.
    tail = flat[bulk:]
    out_tail = jnp.where(tail <= threshold, val, tail)
    return jnp.concatenate([out_bulk, out_tail]).reshape(x.shape)


if __name__ == "__main__":
    # Deterministic "parameters" (module __init__ uses random.random()).
    random.seed(0)
    threshold = random.random()
    value = threshold + random.random()

    def ref(x):
        # PyTorch-exact semantics (NaN preserved).
        return jnp.where(x <= threshold, jnp.asarray(value, x.dtype), x)

    key = jax.random.PRNGKey(0)
    k1, k2, k3 = jax.random.split(key, 3)

    # Spec shape (tiny -> fused XLA fast path).
    x_small = jax.random.normal(k1, (2, 4, 16, 16), dtype=jnp.float32)
    # Larger, 1024-aligned shape -> Pallas streaming path with a 2-step grid.
    x_big = jax.random.normal(k2, (4, 8, 64, 64), dtype=jnp.float32)
    # Misaligned shape -> Pallas bulk + jnp.where tail path; includes a NaN.
    x_rag = jax.random.normal(k3, (3, 7, 61, 53), dtype=jnp.float32)
    x_rag = x_rag.at[0, 0, 0, 0].set(jnp.nan)

    for x in (x_small, x_big, x_rag):
        out = jax.block_until_ready(f_threshold(x, threshold, value))
        assert out.shape == x.shape and out.dtype == x.dtype
        assert jnp.allclose(out, ref(x), equal_nan=True), "mismatch vs reference"

    # NaN must survive (PyTorch: NaN <= threshold is False -> keep NaN).
    assert bool(jnp.isnan(f_threshold(x_rag, threshold, value)[0, 0, 0, 0]))

    print("KERNEL_OK")
</pallas_src>

<mosaic_0001>
module attributes {stable_mosaic.version = 11 : i64} {
  func.func @kernel(%arg0: i32, %arg1: memref<64x1024xf32, #tpu.memory_space<vmem>>, %arg2: memref<64x1024xf32, #tpu.memory_space<vmem>>) attributes {dimension_semantics = [#tpu.dimension_semantics<parallel>], iteration_bounds = array<i64: 2>, scalar_prefetch = 0 : i64, scratch_operands = 0 : i64, tpu.core_type = #tpu.core_type<tc>, window_params = [{transform_indices = @transform_0, window_bounds = array<i64: 64, 1024>}, {transform_indices = @transform_1, window_bounds = array<i64: 64, 1024>}]} {
    %c0 = arith.constant 0 : index
    %c0_0 = arith.constant 0 : index
    %0 = vector.load %arg1[%c0, %c0_0] : memref<64x1024xf32, #tpu.memory_space<vmem>>, vector<64x1024xf32>
    %cst = arith.constant 0.844421863 : f32
    %1 = vector.broadcast %cst : f32 to vector<64x1024xf32>
    %2 = arith.cmpf ole, %0, %1 : vector<64x1024xf32>
    %cst_1 = arith.constant 1.60237622 : f32
    %3 = vector.broadcast %cst_1 : f32 to vector<64x1024xf32>
    %4 = arith.select %2, %3, %0 : vector<64x1024xi1>, vector<64x1024xf32>
    %c0_2 = arith.constant 0 : index
    %c0_3 = arith.constant 0 : index
    %5 = vector.load %arg2[%c0_2, %c0_3] : memref<64x1024xf32, #tpu.memory_space<vmem>>, vector<64x1024xf32>
    tpu.vector_store %arg2[%c0_2, %c0_3], %4 {strides = array<i32>} : memref<64x1024xf32, #tpu.memory_space<vmem>>, vector<64x1024xf32>,
    return
  }
  func.func @transform_0(%arg0: i32) -> (i32, i32) {
    %c0_i32 = arith.constant 0 : i32
    %c0_i32_0 = arith.constant 0 : i32
    return %arg0, %c0_i32 : i32, i32
  }
  func.func @transform_1(%arg0: i32) -> (i32, i32) {
    %c0_i32 = arith.constant 0 : i32
    %c0_i32_0 = arith.constant 0 : i32
    return %arg0, %c0_i32 : i32, i32
  }
}

</mosaic_0001>

<llo_original>
// kernel: tpu_custom_call.1
$region0: #{tpu_custom_call.1}
  #allocation0 [shape = 'u32[]', space=smem, size = 0x4, offset = 0x4, fixed_abs, tag = 'smem constant byte address 0x4 - core index']
  #allocation1 [shape = 'u32[72,128]{1,0:T(1,128)}', space=vmem, size = 0x9000, scoped, tag = 'internal scratch']
  %s0 = inlined_call_operand.hbm [shape: f32[128,1024], index: 0, kind: input, shape index: {}]
  %s1 = inlined_call_operand.hbm [shape: f32[128,1024], index: 1, kind: output, shape index: {}]
  %s2 = sld [smem:[#allocation0]]
  $region41: #{tpu_custom_call.1} parent=0
    _
  %s4 = ssub.s32 1, %s2
  %s5 = scalar_select 0, %s4, %s2
  $region1: #{tpu_custom_call.1} parent=0
    #allocation2 [shape = 'u8[524288]{0}', space=vmem, size = 0x80000, scoped, tag = 'input window, operand 0']
    #allocation3 [shape = 's32[2]{0}', space=sflag, size = 0x8, scoped, tag = 'scoped memory for tpu_custom_call.1']
    #allocation4 [shape = 's32[2]{0}', space=sflag, size = 0x8, scoped, tag = 'scoped memory for tpu_custom_call.1']
    #allocation5 [shape = 'u8[524288]{0}', space=vmem, size = 0x80000, scoped, tag = 'output window, operand 0']
    %6 = vsyncpa [#allocation3], 0
    %s7 = scalar_lea.sflag [#allocation3], 1
    %8 = vsyncpa %s7, 0
    %9 = vsyncpa [#allocation4], 0
    %s10 = scalar_lea.sflag [#allocation4], 1
    %11 = vsyncpa %s10, 0
    loop: start=0, step=1, limit=4
    $region2: #{tpu_custom_call.1} parent=1 // loop_pre_header
      _
    $region3: #{tpu_custom_call.1} parent=1 // loop_header
      %s13 = sphi 0, %s17
      %p14 = scmp.ge.s32.totalorder %s13, 4
      %s23 = sphi 0, %s25
      %s26 = sphi 0, %s23
      %s27 = sphi 0, %s26
      %s43 = sphi 0, %s27
      %s49 = sphi 0, %s51
      %s52 = sphi 0, %s49
      %s53 = sphi 0, %s52
      %s69 = sphi 0, %s53
    $region4: #{tpu_custom_call.1} parent=1 // loop_header_branch
      %16 = sbr.rel (%p14) target = $region8
    $region5: #{tpu_custom_call.1} parent=1 // loop_body
      %s18 = ssub.s32 %s13, 1
      %s19 = ssub.s32 %s13, 2
      %s20 = sadd.s32 %s13, 1
      %s21 = ssub.s32 %s13, %s20
      %p22 = scmp.eq.s32.totalorder %s21, 0
      %s24 = sadd.s32 %s23, 1
      %s25 = scalar_select %p22, %s23, %s24
      %p28 = pneg %p22
      %p29 = scmp.eq.s32.totalorder %s13, 1
      %p30 = por %p28, %p29
      %p31 = scmp.ne.s32.totalorder %s23, %s26
      %p32 = scmp.eq.s32.totalorder %s13, 0
      %p33 = por %p31, %p32
      %p34 = scmp.ne.s32.totalorder %s23, %s26
      %p35 = scmp.eq.s32.totalorder %s18, 1
      %p36 = por %p34, %p35
      %p37 = scmp.ne.s32.totalorder %s26, %s27
      %p38 = scmp.eq.s32.totalorder %s18, 0
      %p39 = por %p37, %p38
      %p40 = scmp.ne.s32.totalorder %s26, %s27
      %p41 = scmp.eq.s32.totalorder %s19, 1
      %p42 = por %p40, %p41
      %p44 = scmp.ne.s32.totalorder %s27, %s43
      %p45 = scmp.eq.s32.totalorder %s19, 0
      %p46 = por %p44, %p45
      %s47 = ssub.s32 %s13, %s20
      %p48 = scmp.eq.s32.totalorder %s47, 0
      %s50 = sadd.s32 %s49, 1
      %s51 = scalar_select %p48, %s49, %s50
      %p54 = pneg %p48
      %p55 = scmp.eq.s32.totalorder %s13, 1
      %p56 = por %p54, %p55
      %p57 = scmp.ne.s32.totalorder %s49, %s52
      %p58 = scmp.eq.s32.totalorder %s13, 0
      %p59 = por %p57, %p58
      %p60 = scmp.ne.s32.totalorder %s49, %s52
      %p61 = scmp.eq.s32.totalorder %s18, 1
      %p62 = por %p60, %p61
      %p63 = scmp.ne.s32.totalorder %s52, %s53
      %p64 = scmp.eq.s32.totalorder %s18, 0
      %p65 = por %p63, %p64
      %p66 = scmp.ne.s32.totalorder %s52, %s53
      %p67 = scmp.eq.s32.totalorder %s19, 1
      %p68 = por %p66, %p67
      %p70 = scmp.ne.s32.totalorder %s53, %s69
      %p71 = scmp.eq.s32.totalorder %s19, 0
      %p72 = por %p70, %p71
      %p73 = scmp.le.s32.totalorder 1, %s13
      %p74 = scmp.lt.s32.totalorder %s13, 3
      %p75 = pnand %p73, %p74
      %p76 = pneg %p75
      // Predicated region
      $region9: #{tpu_custom_call.1} parent=5 // pred_check
        _
      $region10: #{tpu_custom_call.1} parent=5 // pred_check_branch
        %78 = sbr.rel (%p75) target = $region12
      $region11: #{tpu_custom_call.1} parent=5 // pred_region
        %s79 = ssub.s32 %s13, 1
      $region12: #{tpu_custom_call.1} parent=5 // pred_fallthru
        _
      %p80 = scmp.lt.s32.totalorder %s13, 2
      // Predicated region
      $region13: #{tpu_custom_call.1} parent=5 // pred_check
        %p81 = pneg %p80
      $region14: #{tpu_custom_call.1} parent=5 // pred_check_branch
        %83 = sbr.rel (%p81) target = $region16
      $region15: #{tpu_custom_call.1} parent=5 // pred_region
        // Predicated region
        $region17: #{tpu_custom_call.1} parent=15 // pred_check
          %p84 = pneg %p33
        $region18: #{tpu_custom_call.1} parent=15 // pred_check_branch
          %86 = sbr.rel (%p84) target = $region20
        $region19: #{tpu_custom_call.1} parent=15 // pred_region
          %s87 = sand.u32 %s23, 1
          %s88 = scalar_lea.sflag [#allocation3], %s87
          %s89 = sand.u32 %s23, 1
          %s90 = smul.addr %s89, 512
          %s91 = scalar_lea.vmem [#allocation2], %s90
          %s92 = smul.u32 8, %s13
          %94 = vsyncadd %s88, 0
          %s95 = smul.addr %s92, 8
          %s96 = smul.addr %s95, 8
          %s97 = scalar_lea.hbm %s0, %s96
          %s98 = sshll.u32 %s97, 4
          %s99 = int_to_ptr.hbm [resolvable:$true] %s98
          %s100 = sshll.u32 %s91, 4
          %s101 = int_to_ptr.vmem [resolvable:$true] %s100
          %106 = dma.hbm_to_vmem [thread:$0]  %s99, 8192, %s101, %s88, 1024, 1024, 64
        $region20: #{tpu_custom_call.1} parent=15 // pred_fallthru
          _
      $region16: #{tpu_custom_call.1} parent=5 // pred_fallthru
        _
      %p107 = scmp.le.s32.totalorder 1, %s13
      %p108 = scmp.lt.s32.totalorder %s13, 3
      %p109 = pnand %p107, %p108
      %p110 = pneg %p109
      // Predicated region
      $region21: #{tpu_custom_call.1} parent=5 // pred_check
        _
      $region22: #{tpu_custom_call.1} parent=5 // pred_check_branch
        %112 = sbr.rel (%p109) target = $region24
      $region23: #{tpu_custom_call.1} parent=5 // pred_region
        %s113 = ssub.s32 %s13, 1
        %s114 = sand.u32 %s26, 1
        %s115 = scalar_lea.sflag [#allocation3], %s114
        %s116 = sand.u32 %s26, 1
        %s117 = smul.addr %s116, 512
        %s118 = scalar_lea.vmem [#allocation2], %s117
        // Predicated region
        $region25: #{tpu_custom_call.1} parent=23 // pred_check
          %p119 = pneg %p39
        $region26: #{tpu_custom_call.1} parent=23 // pred_check_branch
          %121 = sbr.rel (%p119) target = $region28
        $region27: #{tpu_custom_call.1} parent=23 // pred_region
          %123 = dma.done %s115, 8192
        $region28: #{tpu_custom_call.1} parent=23 // pred_fallthru
          _
        %s124 = sand.u32 %s26, 1
        %s125 = scalar_lea.sflag [#allocation3], %s124
        %s126 = sand.u32 %s26, 1
        %s127 = smul.addr %s126, 512
        %s128 = scalar_lea.vmem [#allocation2], %s127
        %p129 = pneg %p39
        %p130 = pneg %p36
        %p131 = pneg %p65
        %p132 = pneg %p62
        %s133 = sand.u32 %s52, 1
        %s134 = scalar_lea.sflag [#allocation4], %s133
        %s135 = sand.u32 %s52, 1
        %s136 = smul.addr %s135, 512
        %s137 = scalar_lea.vmem [#allocation5], %s136
        %s138 = smul.u32 8, %s18
        %s139 = smul.u32 8, %s18
        %v140 = vld [vmem:[%s118] sm:$0xff]
        %v141 = vld [vmem:[%s118 + $0x8] sm:$0xff]
        %v142 = vld [vmem:[%s118 + $0x10] sm:$0xff]
        %v143 = vld [vmem:[%s118 + $0x18] sm:$0xff]
        %v144 = vld [vmem:[%s118 + $0x20] sm:$0xff]
        %v145 = vld [vmem:[%s118 + $0x28] sm:$0xff]
        %v146 = vld [vmem:[%s118 + $0x30] sm:$0xff]
        %v147 = vld [vmem:[%s118 + $0x38] sm:$0xff]
        %v148 = vld [vmem:[%s118 + $0x40] sm:$0xff]
        %v149 = vld [vmem:[%s118 + $0x48] sm:$0xff]
        %v150 = vld [vmem:[%s118 + $0x50] sm:$0xff]
        %v151 = vld [vmem:[%s118 + $0x58] sm:$0xff]
        %v152 = vld [vmem:[%s118 + $0x60] sm:$0xff]
        %v153 = vld [vmem:[%s118 + $0x68] sm:$0xff]
        %v154 = vld [vmem:[%s118 + $0x70] sm:$0xff]
        %v155 = vld [vmem:[%s118 + $0x78] sm:$0xff]
        %v156 = vld [vmem:[%s118 + $0x80] sm:$0xff]
        %v157 = vld [vmem:[%s118 + $0x88] sm:$0xff]
        %v158 = vld [vmem:[%s118 + $0x90] sm:$0xff]
        %v159 = vld [vmem:[%s118 + $0x98] sm:$0xff]
        %v160 = vld [vmem:[%s118 + $0xa0] sm:$0xff]
        %v161 = vld [vmem:[%s118 + $0xa8] sm:$0xff]
        %v162 = vld [vmem:[%s118 + $0xb0] sm:$0xff]
        %v163 = vld [vmem:[%s118 + $0xb8] sm:$0xff]
        %v164 = vld [vmem:[%s118 + $0xc0] sm:$0xff]
        %v165 = vld [vmem:[%s118 + $0xc8] sm:$0xff]
        %v166 = vld [vmem:[%s118 + $0xd0] sm:$0xff]
        %v167 = vld [vmem:[%s118 + $0xd8] sm:$0xff]
        %v168 = vld [vmem:[%s118 + $0xe0] sm:$0xff]
        %v169 = vld [vmem:[%s118 + $0xe8] sm:$0xff]
        %v170 = vld [vmem:[%s118 + $0xf0] sm:$0xff]
        %v171 = vld [vmem:[%s118 + $0xf8] sm:$0xff]
        %v172 = vld [vmem:[%s118 + $0x100] sm:$0xff]
        %v173 = vld [vmem:[%s118 + $0x108] sm:$0xff]
        %v174 = vld [vmem:[%s118 + $0x110] sm:$0xff]
        %v175 = vld [vmem:[%s118 + $0x118] sm:$0xff]
        %v176 = vld [vmem:[%s118 + $0x120] sm:$0xff]
        %v177 = vld [vmem:[%s118 + $0x128] sm:$0xff]
        %v178 = vld [vmem:[%s118 + $0x130] sm:$0xff]
        %v179 = vld [vmem:[%s118 + $0x138] sm:$0xff]
        %v180 = vld [vmem:[%s118 + $0x140] sm:$0xff]
        %v181 = vld [vmem:[%s118 + $0x148] sm:$0xff]
        %v182 = vld [vmem:[%s118 + $0x150] sm:$0xff]
        %v183 = vld [vmem:[%s118 + $0x158] sm:$0xff]
        %v184 = vld [vmem:[%s118 + $0x160] sm:$0xff]
        %v185 = vld [vmem:[%s118 + $0x168] sm:$0xff]
        %v186 = vld [vmem:[%s118 + $0x170] sm:$0xff]
        %v187 = vld [vmem:[%s118 + $0x178] sm:$0xff]
        %v188 = vld [vmem:[%s118 + $0x180] sm:$0xff]
        %v189 = vld [vmem:[%s118 + $0x188] sm:$0xff]
        %v190 = vld [vmem:[%s118 + $0x190] sm:$0xff]
        %v191 = vld [vmem:[%s118 + $0x198] sm:$0xff]
        %v192 = vld [vmem:[%s118 + $0x1a0] sm:$0xff]
        %v193 = vld [vmem:[%s118 + $0x1a8] sm:$0xff]
        %v194 = vld [vmem:[%s118 + $0x1b0] sm:$0xff]
        %v195 = vld [vmem:[%s118 + $0x1b8] sm:$0xff]
        %v196 = vld [vmem:[%s118 + $0x1c0] sm:$0xff]
        %v197 = vld [vmem:[%s118 + $0x1c8] sm:$0xff]
        %v198 = vld [vmem:[%s118 + $0x1d0] sm:$0xff]
        %v199 = vld [vmem:[%s118 + $0x1d8] sm:$0xff]
        %v200 = vld [vmem:[%s118 + $0x1e0] sm:$0xff]
        %v201 = vld [vmem:[%s118 + $0x1e8] sm:$0xff]
        %v202 = vld [vmem:[%s118 + $0x1f0] sm:$0xff]
        %v203 = vld [vmem:[%s118 + $0x1f8] sm:$0xff]
        %vm204 = vcmp.le.f32.partialorder %v140, 0.84442186
        %vm205 = vcmp.le.f32.partialorder %v141, 0.84442186
        %vm206 = vcmp.le.f32.partialorder %v142, 0.84442186
        %vm207 = vcmp.le.f32.partialorder %v143, 0.84442186
        %vm208 = vcmp.le.f32.partialorder %v144, 0.84442186
        %vm209 = vcmp.le.f32.partialorder %v145, 0.84442186
        %vm210 = vcmp.le.f32.partialorder %v146, 0.84442186
        %vm211 = vcmp.le.f32.partialorder %v147, 0.84442186
        %vm212 = vcmp.le.f32.partialorder %v148, 0.84442186
        %vm213 = vcmp.le.f32.partialorder %v149, 0.84442186
        %vm214 = vcmp.le.f32.partialorder %v150, 0.84442186
        %vm215 = vcmp.le.f32.partialorder %v151, 0.84442186
        %vm216 = vcmp.le.f32.partialorder %v152, 0.84442186
        %vm217 = vcmp.le.f32.partialorder %v153, 0.84442186
        %vm218 = vcmp.le.f32.partialorder %v154, 0.84442186
        %vm219 = vcmp.le.f32.partialorder %v155, 0.84442186
        %vm220 = vcmp.le.f32.partialorder %v156, 0.84442186
        %vm221 = vcmp.le.f32.partialorder %v157, 0.84442186
        %vm222 = vcmp.le.f32.partialorder %v158, 0.84442186
        %vm223 = vcmp.le.f32.partialorder %v159, 0.84442186
        %vm224 = vcmp.le.f32.partialorder %v160, 0.84442186
        %vm225 = vcmp.le.f32.partialorder %v161, 0.84442186
        %vm226 = vcmp.le.f32.partialorder %v162, 0.84442186
        %vm227 = vcmp.le.f32.partialorder %v163, 0.84442186
        %vm228 = vcmp.le.f32.partialorder %v164, 0.84442186
        %vm229 = vcmp.le.f32.partialorder %v165, 0.84442186
        %vm230 = vcmp.le.f32.partialorder %v166, 0.84442186
        %vm231 = vcmp.le.f32.partialorder %v167, 0.84442186
        %vm232 = vcmp.le.f32.partialorder %v168, 0.84442186
        %vm233 = vcmp.le.f32.partialorder %v169, 0.84442186
        %vm234 = vcmp.le.f32.partialorder %v170, 0.84442186
        %vm235 = vcmp.le.f32.partialorder %v171, 0.84442186
        %vm236 = vcmp.le.f32.partialorder %v172, 0.84442186
        %vm237 = vcmp.le.f32.partialorder %v173, 0.84442186
        %vm238 = vcmp.le.f32.partialorder %v174, 0.84442186
        %vm239 = vcmp.le.f32.partialorder %v175, 0.84442186
        %vm240 = vcmp.le.f32.partialorder %v176, 0.84442186
        %vm241 = vcmp.le.f32.partialorder %v177, 0.84442186
        %vm242 = vcmp.le.f32.partialorder %v178, 0.84442186
        %vm243 = vcmp.le.f32.partialorder %v179, 0.84442186
        %vm244 = vcmp.le.f32.partialorder %v180, 0.84442186
        %vm245 = vcmp.le.f32.partialorder %v181, 0.84442186
        %vm246 = vcmp.le.f32.partialorder %v182, 0.84442186
        %vm247 = vcmp.le.f32.partialorder %v183, 0.84442186
        %vm248 = vcmp.le.f32.partialorder %v184, 0.84442186
        %vm249 = vcmp.le.f32.partialorder %v185, 0.84442186
        %vm250 = vcmp.le.f32.partialorder %v186, 0.84442186
        %vm251 = vcmp.le.f32.partialorder %v187, 0.84442186
        %vm252 = vcmp.le.f32.partialorder %v188, 0.84442186
        %vm253 = vcmp.le.f32.partialorder %v189, 0.84442186
        %vm254 = vcmp.le.f32.partialorder %v190, 0.84442186
        %vm255 = vcmp.le.f32.partialorder %v191, 0.84442186
        %vm256 = vcmp.le.f32.partialorder %v192, 0.84442186
        %vm257 = vcmp.le.f32.partialorder %v193, 0.84442186
        %vm258 = vcmp.le.f32.partialorder %v194, 0.84442186
        %vm259 = vcmp.le.f32.partialorder %v195, 0.84442186
        %vm260 = vcmp.le.f32.partialorder %v196, 0.84442186
        %vm261 = vcmp.le.f32.partialorder %v197, 0.84442186
        %vm262 = vcmp.le.f32.partialorder %v198, 0.84442186
        %vm263 = vcmp.le.f32.partialorder %v199, 0.84442186
        %vm264 = vcmp.le.f32.partialorder %v200, 0.84442186
        %vm265 = vcmp.le.f32.partialorder %v201, 0.84442186
        %vm266 = vcmp.le.f32.partialorder %v202, 0.84442186
        %vm267 = vcmp.le.f32.partialorder %v203, 0.84442186
        %v268 = vsel %vm204, 1.6023762, %v140
        %v269 = vsel %vm205, 1.6023762, %v141
        %v270 = vsel %vm206, 1.6023762, %v142
        %v271 = vsel %vm207, 1.6023762, %v143
        %v272 = vsel %vm208, 1.6023762, %v144
        %v273 = vsel %vm209, 1.6023762, %v145
        %v274 = vsel %vm210, 1.6023762, %v146
        %v275 = vsel %vm211, 1.6023762, %v147
        %v276 = vsel %vm212, 1.6023762, %v148
        %v277 = vsel %vm213, 1.6023762, %v149
        %v278 = vsel %vm214, 1.6023762, %v150
        %v279 = vsel %vm215, 1.6023762, %v151
        %v280 = vsel %vm216, 1.6023762, %v152
        %v281 = vsel %vm217, 1.6023762, %v153
        %v282 = vsel %vm218, 1.6023762, %v154
        %v283 = vsel %vm219, 1.6023762, %v155
        %v284 = vsel %vm220, 1.6023762, %v156
        %v285 = vsel %vm221, 1.6023762, %v157
        %v286 = vsel %vm222, 1.6023762, %v158
        %v287 = vsel %vm223, 1.6023762, %v159
        %v288 = vsel %vm224, 1.6023762, %v160
        %v289 = vsel %vm225, 1.6023762, %v161
        %v290 = vsel %vm226, 1.6023762, %v162
        %v291 = vsel %vm227, 1.6023762, %v163
        %v292 = vsel %vm228, 1.6023762, %v164
        %v293 = vsel %vm229, 1.6023762, %v165
        %v294 = vsel %vm230, 1.6023762, %v166
        %v295 = vsel %vm231, 1.6023762, %v167
        %v296 = vsel %vm232, 1.6023762, %v168
        %v297 = vsel %vm233, 1.6023762, %v169
        %v298 = vsel %vm234, 1.6023762, %v170
        %v299 = vsel %vm235, 1.6023762, %v171
        %v300 = vsel %vm236, 1.6023762, %v172
        %v301 = vsel %vm237, 1.6023762, %v173
        %v302 = vsel %vm238, 1.6023762, %v174
        %v303 = vsel %vm239, 1.6023762, %v175
        %v304 = vsel %vm240, 1.6023762, %v176
        %v305 = vsel %vm241, 1.6023762, %v177
        %v306 = vsel %vm242, 1.6023762, %v178
        %v307 = vsel %vm243, 1.6023762, %v179
        %v308 = vsel %vm244, 1.6023762, %v180
        %v309 = vsel %vm245, 1.6023762, %v181
        %v310 = vsel %vm246, 1.6023762, %v182
        %v311 = vsel %vm247, 1.6023762, %v183
        %v312 = vsel %vm248, 1.6023762, %v184
        %v313 = vsel %vm249, 1.6023762, %v185
        %v314 = vsel %vm250, 1.6023762, %v186
        %v315 = vsel %vm251, 1.6023762, %v187
        %v316 = vsel %vm252, 1.6023762, %v188
        %v317 = vsel %vm253, 1.6023762, %v189
        %v318 = vsel %vm254, 1.6023762, %v190
        %v319 = vsel %vm255, 1.6023762, %v191
        %v320 = vsel %vm256, 1.6023762, %v192
        %v321 = vsel %vm257, 1.6023762, %v193
        %v322 = vsel %vm258, 1.6023762, %v194
        %v323 = vsel %vm259, 1.6023762, %v195
        %v324 = vsel %vm260, 1.6023762, %v196
        %v325 = vsel %vm261, 1.6023762, %v197
        %v326 = vsel %vm262, 1.6023762, %v198
        %v327 = vsel %vm263, 1.6023762, %v199
        %v328 = vsel %vm264, 1.6023762, %v200
        %v329 = vsel %vm265, 1.6023762, %v201
        %v330 = vsel %vm266, 1.6023762, %v202
        %v331 = vsel %vm267, 1.6023762, %v203
        %332 = vst [vmem:[%s137] sm:$0xff] %v268
        %333 = vst [vmem:[%s137 + $0x8] sm:$0xff] %v269
        %334 = vst [vmem:[%s137 + $0x10] sm:$0xff] %v270
        %335 = vst [vmem:[%s137 + $0x18] sm:$0xff] %v271
        %336 = vst [vmem:[%s137 + $0x20] sm:$0xff] %v272
        %337 = vst [vmem:[%s137 + $0x28] sm:$0xff] %v273
        %338 = vst [vmem:[%s137 + $0x30] sm:$0xff] %v274
        %339 = vst [vmem:[%s137 + $0x38] sm:$0xff] %v275
        %340 = vst [vmem:[%s137 + $0x40] sm:$0xff] %v276
        %341 = vst [vmem:[%s137 + $0x48] sm:$0xff] %v277
        %342 = vst [vmem:[%s137 + $0x50] sm:$0xff] %v278
        %343 = vst [vmem:[%s137 + $0x58] sm:$0xff] %v279
        %344 = vst [vmem:[%s137 + $0x60] sm:$0xff] %v280
        %345 = vst [vmem:[%s137 + $0x68] sm:$0xff] %v281
        %346 = vst [vmem:[%s137 + $0x70] sm:$0xff] %v282
        %347 = vst [vmem:[%s137 + $0x78] sm:$0xff] %v283
        %348 = vst [vmem:[%s137 + $0x80] sm:$0xff] %v284
        %349 = vst [vmem:[%s137 + $0x88] sm:$0xff] %v285
        %350 = vst [vmem:[%s137 + $0x90] sm:$0xff] %v286
        %351 = vst [vmem:[%s137 + $0x98] sm:$0xff] %v287
        %352 = vst [vmem:[%s137 + $0xa0] sm:$0xff] %v288
        %353 = vst [vmem:[%s137 + $0xa8] sm:$0xff] %v289
        %354 = vst [vmem:[%s137 + $0xb0] sm:$0xff] %v290
        %355 = vst [vmem:[%s137 + $0xb8] sm:$0xff] %v291
        %356 = vst [vmem:[%s137 + $0xc0] sm:$0xff] %v292
        %357 = vst [vmem:[%s137 + $0xc8] sm:$0xff] %v293
        %358 = vst [vmem:[%s137 + $0xd0] sm:$0xff] %v294
        %359 = vst [vmem:[%s137 + $0xd8] sm:$0xff] %v295
        %360 = vst [vmem:[%s137 + $0xe0] sm:$0xff] %v296
        %361 = vst [vmem:[%s137 + $0xe8] sm:$0xff] %v297
        %362 = vst [vmem:[%s137 + $0xf0] sm:$0xff] %v298
        %363 = vst [vmem:[%s137 + $0xf8] sm:$0xff] %v299
        %364 = vst [vmem:[%s137 + $0x100] sm:$0xff] %v300
        %365 = vst [vmem:[%s137 + $0x108] sm:$0xff] %v301
        %366 = vst [vmem:[%s137 + $0x110] sm:$0xff] %v302
        %367 = vst [vmem:[%s137 + $0x118] sm:$0xff] %v303
        %368 = vst [vmem:[%s137 + $0x120] sm:$0xff] %v304
        %369 = vst [vmem:[%s137 + $0x128] sm:$0xff] %v305
        %370 = vst [vmem:[%s137 + $0x130] sm:$0xff] %v306
        %371 = vst [vmem:[%s137 + $0x138] sm:$0xff] %v307
        %372 = vst [vmem:[%s137 + $0x140] sm:$0xff] %v308
        %373 = vst [vmem:[%s137 + $0x148] sm:$0xff] %v309
        %374 = vst [vmem:[%s137 + $0x150] sm:$0xff] %v310
        %375 = vst [vmem:[%s137 + $0x158] sm:$0xff] %v311
        %376 = vst [vmem:[%s137 + $0x160] sm:$0xff] %v312
        %377 = vst [vmem:[%s137 + $0x168] sm:$0xff] %v313
        %378 = vst [vmem:[%s137 + $0x170] sm:$0xff] %v314
        %379 = vst [vmem:[%s137 + $0x178] sm:$0xff] %v315
        %380 = vst [vmem:[%s137 + $0x180] sm:$0xff] %v316
        %381 = vst [vmem:[%s137 + $0x188] sm:$0xff] %v317
        %382 = vst [vmem:[%s137 + $0x190] sm:$0xff] %v318
        %383 = vst [vmem:[%s137 + $0x198] sm:$0xff] %v319
        %384 = vst [vmem:[%s137 + $0x1a0] sm:$0xff] %v320
        %385 = vst [vmem:[%s137 + $0x1a8] sm:$0xff] %v321
        %386 = vst [vmem:[%s137 + $0x1b0] sm:$0xff] %v322
        %387 = vst [vmem:[%s137 + $0x1b8] sm:$0xff] %v323
        %388 = vst [vmem:[%s137 + $0x1c0] sm:$0xff] %v324
        %389 = vst [vmem:[%s137 + $0x1c8] sm:$0xff] %v325
        %390 = vst [vmem:[%s137 + $0x1d0] sm:$0xff] %v326
        %391 = vst [vmem:[%s137 + $0x1d8] sm:$0xff] %v327
        %392 = vst [vmem:[%s137 + $0x1e0] sm:$0xff] %v328
        %393 = vst [vmem:[%s137 + $0x1e8] sm:$0xff] %v329
        %394 = vst [vmem:[%s137 + $0x1f0] sm:$0xff] %v330
        %395 = vst [vmem:[%s137 + $0x1f8] sm:$0xff] %v331
        %s396 = sand.u32 %s52, 1
        %s397 = scalar_lea.sflag [#allocation4], %s396
        %s398 = sand.u32 %s52, 1
        %s399 = smul.addr %s398, 512
        %s400 = scalar_lea.vmem [#allocation5], %s399
        // Predicated region
        $region29: #{tpu_custom_call.1} parent=23 // pred_check
          %p401 = pneg %p62
        $region30: #{tpu_custom_call.1} parent=23 // pred_check_branch
          %403 = sbr.rel (%p401) target = $region32
        $region31: #{tpu_custom_call.1} parent=23 // pred_region
          %s404 = smul.u32 8, %s18
          %406 = vsyncadd %s397, 0
          %s407 = smul.addr %s404, 8
          %s408 = smul.addr %s407, 8
          %s409 = scalar_lea.hbm %s1, %s408
          %s410 = sshll.u32 %s400, 4
          %s411 = int_to_ptr.vmem [resolvable:$true] %s410
          %s412 = sshll.u32 %s409, 4
          %s413 = int_to_ptr.hbm [resolvable:$true] %s412
          %418 = dma.vmem_to_hbm [thread:$0]  %s411, 8192, %s413, %s397, 1024, 1024, 64
        $region32: #{tpu_custom_call.1} parent=23 // pred_fallthru
          _
      $region24: #{tpu_custom_call.1} parent=5 // pred_fallthru
        _
      %p419 = scmp.le.s32.totalorder 2, %s13
      // Predicated region
      $region33: #{tpu_custom_call.1} parent=5 // pred_check
        %p420 = pneg %p419
      $region34: #{tpu_custom_call.1} parent=5 // pred_check_branch
        %422 = sbr.rel (%p420) target = $region36
      $region35: #{tpu_custom_call.1} parent=5 // pred_region
        %s423 = ssub.s32 %s13, 2
        // Predicated region
        $region37: #{tpu_custom_call.1} parent=35 // pred_check
          %p424 = pneg %p68
        $region38: #{tpu_custom_call.1} parent=35 // pred_check_branch
          %426 = sbr.rel (%p424) target = $region40
        $region39: #{tpu_custom_call.1} parent=35 // pred_region
          %s427 = sand.u32 %s53, 1
          %s428 = scalar_lea.sflag [#allocation4], %s427
          %s429 = sand.u32 %s53, 1
          %s430 = smul.addr %s429, 512
          %s431 = scalar_lea.vmem [#allocation5], %s430
          %433 = dma.done %s428, 8192
        $region40: #{tpu_custom_call.1} parent=35 // pred_fallthru
          _
      $region36: #{tpu_custom_call.1} parent=5 // pred_fallthru
        _
    $region6: #{tpu_custom_call.1} parent=1 // loop_footer
      %s17 = sadd.s32 1, %s13
    $region7: #{tpu_custom_call.1} parent=1 // loop_footer_branch
      %12 = sbr.rel target = $region3
    $region8: #{tpu_custom_call.1} parent=1 // loop_exit
      _
    %434 = vsyncpa [#allocation3], 1
    %s435 = scalar_lea.sflag [#allocation3], 1
    %436 = vsyncpa %s435, 1
    %437 = vsyncpa [#allocation4], 1
    %s438 = scalar_lea.sflag [#allocation4], 1
    %439 = vsyncpa %s438, 1

</llo_original>
